<compile_context>
chip_gen: v7x
topology: tpu7x:2x2x1
jax: 0.10.0
libtpu: 0.0.40
codegen_flags: <defaults>
</compile_context>

<pallas_src>
import jax
import jax.numpy as jnp
from jax.experimental import pallas as pl
from jax.experimental.pallas import tpu as pltpu

LANE = 128
MAX_ROW_TILE = 4096  # rows per tile: 4096*128*4B = 2 MiB per f32 input buffer


def _round_up(x, m):
    return ((x + m - 1) // m) * m


def _make_bce_kernel(row_tile, num_tiles, total, needs_mask):
    """Builds the per-tile kernel with all shape parameters baked in statically."""
    pad_rows = (-row_tile) % 8          # only nonzero for tiny full-array blocks
    full_rows = total // LANE           # rows that are entirely valid
    rem = total % LANE                  # valid lanes in the (possibly) ragged last row

    def _reduce(loss):
        # Partial sum emitted as a full (8, LANE) block -> unmasked store.
        if pad_rows:
            # Tiny-array fallback: collapse to one row, place it in row 0.
            s = jnp.sum(loss, axis=0, keepdims=True)                    # (1, LANE)
            row = jax.lax.broadcasted_iota(jnp.int32, (8, LANE), 0)
            return jnp.where(row == 0, s, 0.0)                          # (8, LANE)
        # Vreg-group reduce: one vadd per loaded (8,128) tile.
        return loss.reshape(row_tile // 8, 8, LANE).sum(axis=0)         # (8, LANE)

    def _mask(loss, tile_idx):
        r = jax.lax.broadcasted_iota(jnp.int32, (row_tile, LANE), 0) + tile_idx * row_tile
        c = jax.lax.broadcasted_iota(jnp.int32, (row_tile, LANE), 1)
        valid = (r < full_rows) | ((r == full_rows) & (c < rem))
        return jnp.where(valid, loss, 0.0)

    def kernel(pred_ref, tgt_ref, psum_ref):
        p = pred_ref[...].astype(jnp.float32)
        t = tgt_ref[...].astype(jnp.float32)

        # PyTorch's F.binary_cross_entropy clamps each log term at -100.
        log_p = jnp.maximum(jnp.log(p), -100.0)
        log_1mp = jnp.maximum(jnp.log(1.0 - p), -100.0)
        # Un-negated blend t*log_p + (1-t)*log_1mp written with one fewer VPU op;
        # the leading minus is folded into the JAX epilogue.
        loss = log_1mp + t * (log_p - log_1mp)

        if not needs_mask:
            psum_ref[...] = _reduce(loss)
        elif num_tiles == 1:
            psum_ref[...] = _reduce(_mask(loss, 0))
        else:
            i = pl.program_id(0)
            is_last = i == num_tiles - 1

            @pl.when(is_last)
            def _():
                psum_ref[...] = _reduce(_mask(loss, i))

            @pl.when(jnp.logical_not(is_last))
            def _():
                psum_ref[...] = _reduce(loss)

    return kernel


def binary_cross_entropy(pred, target):
    """Mean-reduced BCE on probabilities, matching torch F.binary_cross_entropy."""
    total = pred.size
    if target.dtype == jnp.bool_:
        target = target.astype(jnp.int8)      # keep labels narrow in HBM

    pred_flat = pred.reshape(-1)
    tgt_flat = target.reshape(-1)             # no wrapper upcast; kernel casts to f32

    lane_pad = (-total) % LANE
    if lane_pad:
        # TODO(synk): element counts that are not a multiple of 128 need a tiny
        # (<=127 elem) tail pad so the lane-dense 2-D view exists; the padded
        # elements are masked out inside the kernel.
        pred_flat = jnp.pad(pred_flat, (0, lane_pad), constant_values=1)
        tgt_flat = jnp.pad(tgt_flat, (0, lane_pad), constant_values=1)
    rows = (total + lane_pad) // LANE

    pred2d = pred_flat.reshape(rows, LANE)
    tgt2d = tgt_flat.reshape(rows, LANE)

    # Sublane packing of the narrowest input dtype: f32 -> 8, bf16 -> 16, int8 -> 32.
    min_itemsize = min(jnp.dtype(pred2d.dtype).itemsize, jnp.dtype(tgt2d.dtype).itemsize)
    align = max(8, 32 // max(1, min_itemsize))

    # Aim for >=2 grid steps (v7x megacore) with tile rows a multiple of `align`,
    # capped so 2 inputs x 2 pipeline buffers stay under v5e's 16 MiB VMEM default.
    row_tile = min(MAX_ROW_TILE, _round_up(pl.cdiv(rows, 2), align))
    if row_tile >= rows:
        row_tile = rows                       # block == full array dims (always legal)
    num_tiles = pl.cdiv(rows, row_tile)

    needs_mask = (lane_pad != 0) or (rows % row_tile != 0)

    kernel = _make_bce_kernel(row_tile, num_tiles, total, needs_mask)

    bytes_accessed = (pred2d.size * pred2d.dtype.itemsize
                      + tgt2d.size * tgt2d.dtype.itemsize
                      + num_tiles * 8 * LANE * 4)

    partial = pl.pallas_call(
        kernel,
        out_shape=jax.ShapeDtypeStruct((num_tiles * 8, LANE), jnp.float32),
        grid_spec=pltpu.PrefetchScalarGridSpec(
            num_scalar_prefetch=0,
            grid=(num_tiles,),
            in_specs=[
                pl.BlockSpec((row_tile, LANE), lambda i: (i, 0)),
                pl.BlockSpec((row_tile, LANE), lambda i: (i, 0)),
            ],
            out_specs=pl.BlockSpec((8, LANE), lambda i: (i, 0)),
        ),
        compiler_params=pltpu.CompilerParams(
            dimension_semantics=("parallel",),
        ),
        cost_estimate=pl.CostEstimate(
            flops=8 * total,
            transcendentals=2 * total,
            bytes_accessed=int(bytes_accessed),
        ),
    )(pred2d, tgt2d)

    # Tiny epilogue in plain JAX: final reduce, folded negation, mean.
    return jnp.sum(partial) / jnp.float32(-total)


class CrossEntropyLoss:
    """JAX/Pallas port of the reference module.

    Note: despite its name, the reference computes F.binary_cross_entropy on
    probabilities (with target.float()), so that is what is implemented here.
    """

    def __call__(self, *inputs):
        pred, target = tuple(inputs)
        return binary_cross_entropy(pred, target)


def _reference_bce(pred, target):
    log_p = jnp.maximum(jnp.log(pred), -100.0)
    log_1mp = jnp.maximum(jnp.log(1.0 - pred), -100.0)
    return -jnp.mean(target * log_p + (1.0 - target) * log_1mp)


if __name__ == "__main__":
    key = jax.random.PRNGKey(0)
    k1, k2, k3, k4 = jax.random.split(key, 4)

    loss_mod = CrossEntropyLoss()

    # Main case: NCHW-like probabilities [2, 4, 16, 16] with binary targets.
    pred = jax.nn.sigmoid(jax.random.normal(k1, (2, 4, 16, 16), jnp.float32))
    target = (jax.random.uniform(k2, (2, 4, 16, 16)) > 0.5).astype(jnp.float32)
    loss = loss_mod(pred, target)
    jax.block_until_ready(loss)
    ref = _reference_bce(pred, target)
    assert jnp.allclose(loss, ref, atol=1e-5, rtol=1e-5), (loss, ref)

    # Ragged case: exercises the in-kernel last-tile mask (rows % row_tile != 0).
    pred_r = jax.nn.sigmoid(jax.random.normal(k3, (2, 4, 16, 24), jnp.float32))
    target_r = (jax.random.uniform(k4, (2, 4, 16, 24)) > 0.5).astype(jnp.float32)
    loss_r = loss_mod(pred_r, target_r)
    jax.block_until_ready(loss_r)
    ref_r = _reference_bce(pred_r, target_r)
    assert jnp.allclose(loss_r, ref_r, atol=1e-5, rtol=1e-5), (loss_r, ref_r)

    print("KERNEL_OK")
</pallas_src>

<mosaic_0001>
module attributes {stable_mosaic.version = 11 : i64} {
  func.func @kernel(%arg0: i32, %arg1: memref<8x128xf32, #tpu.memory_space<vmem>>, %arg2: memref<8x128xf32, #tpu.memory_space<vmem>>, %arg3: memref<8x128xf32, #tpu.memory_space<vmem>>) attributes {dimension_semantics = [#tpu.dimension_semantics<parallel>], iteration_bounds = array<i64: 2>, scalar_prefetch = 0 : i64, scratch_operands = 0 : i64, tpu.core_type = #tpu.core_type<tc>, window_params = [{transform_indices = @transform_0, window_bounds = array<i64: 8, 128>}, {transform_indices = @transform_1, window_bounds = array<i64: 8, 128>}, {transform_indices = @transform_2, window_bounds = array<i64: 8, 128>}]} {
    %c0 = arith.constant 0 : index
    %c0_0 = arith.constant 0 : index
    %0 = vector.load %arg1[%c0, %c0_0] : memref<8x128xf32, #tpu.memory_space<vmem>>, vector<8x128xf32>
    %c0_1 = arith.constant 0 : index
    %c0_2 = arith.constant 0 : index
    %1 = vector.load %arg2[%c0_1, %c0_2] : memref<8x128xf32, #tpu.memory_space<vmem>>, vector<8x128xf32>
    %2 = math.log %0 : vector<8x128xf32>
    %cst = arith.constant -1.000000e+02 : f32
    %3 = vector.broadcast %cst : f32 to vector<8x128xf32>
    %4 = arith.maximumf %2, %3 : vector<8x128xf32>
    %cst_3 = arith.constant 1.000000e+00 : f32
    %5 = vector.broadcast %cst_3 : f32 to vector<8x128xf32>
    %6 = arith.subf %5, %0 : vector<8x128xf32>
    %7 = math.log %6 : vector<8x128xf32>
    %cst_4 = arith.constant -1.000000e+02 : f32
    %8 = vector.broadcast %cst_4 : f32 to vector<8x128xf32>
    %9 = arith.maximumf %7, %8 : vector<8x128xf32>
    %10 = arith.subf %4, %9 : vector<8x128xf32>
    %11 = arith.mulf %1, %10 : vector<8x128xf32>
    %12 = arith.addf %9, %11 : vector<8x128xf32>
    %13 = vector.shape_cast %12 : vector<8x128xf32> to vector<1x8x128xf32>
    %cst_5 = arith.constant dense<0.000000e+00> : vector<8x128xf32>
    %14 = vector.multi_reduction <add>, %13, %cst_5 [0] : vector<1x8x128xf32> to vector<8x128xf32>
    %c0_6 = arith.constant 0 : index
    %c0_7 = arith.constant 0 : index
    %15 = vector.load %arg3[%c0_6, %c0_7] : memref<8x128xf32, #tpu.memory_space<vmem>>, vector<8x128xf32>
    tpu.vector_store %arg3[%c0_6, %c0_7], %14 {strides = array<i32>} : memref<8x128xf32, #tpu.memory_space<vmem>>, vector<8x128xf32>,
    return
  }
  func.func @transform_0(%arg0: i32) -> (i32, i32) {
    %c0_i32 = arith.constant 0 : i32
    %c0_i32_0 = arith.constant 0 : i32
    return %arg0, %c0_i32 : i32, i32
  }
  func.func @transform_1(%arg0: i32) -> (i32, i32) {
    %c0_i32 = arith.constant 0 : i32
    %c0_i32_0 = arith.constant 0 : i32
    return %arg0, %c0_i32 : i32, i32
  }
  func.func @transform_2(%arg0: i32) -> (i32, i32) {
    %c0_i32 = arith.constant 0 : i32
    %c0_i32_0 = arith.constant 0 : i32
    return %arg0, %c0_i32 : i32, i32
  }
}

</mosaic_0001>

<llo_original>
// kernel: tpu_custom_call.1
$region0: #{tpu_custom_call.1}
  #allocation0 [shape = 'u32[]', space=smem, size = 0x4, offset = 0x4, fixed_abs, tag = 'smem constant byte address 0x4 - core index']
  #allocation1 [shape = 'u32[144,128]{1,0:T(1,128)}', space=vmem, size = 0x12000, scoped, tag = 'internal scratch']
  %s0 = inlined_call_operand.hbm [shape: f32[16,128], index: 0, kind: input, shape index: {}]
  %s1 = inlined_call_operand.hbm [shape: f32[16,128], index: 1, kind: input, shape index: {}]
  %s2 = inlined_call_operand.hbm [shape: f32[16,128], index: 2, kind: output, shape index: {}]
  %s3 = sld [smem:[#allocation0]]
  $region49: #{tpu_custom_call.1} parent=0
    _
  %s5 = ssub.s32 1, %s3
  %s6 = scalar_select 0, %s5, %s3
  $region1: #{tpu_custom_call.1} parent=0
    #allocation2 [shape = 'u8[8192]{0}', space=vmem, size = 0x2000, scoped, tag = 'input window, operand 0']
    #allocation3 [shape = 's32[2]{0}', space=sflag, size = 0x8, scoped, tag = 'scoped memory for tpu_custom_call.1']
    #allocation4 [shape = 's32[2]{0}', space=sflag, size = 0x8, scoped, tag = 'scoped memory for tpu_custom_call.1']
    #allocation5 [shape = 'u8[8192]{0}', space=vmem, size = 0x2000, scoped, tag = 'input window, operand 1']
    #allocation6 [shape = 's32[2]{0}', space=sflag, size = 0x8, scoped, tag = 'scoped memory for tpu_custom_call.1']
    #allocation7 [shape = 'u8[8192]{0}', space=vmem, size = 0x2000, scoped, tag = 'output window, operand 0']
    %7 = vsyncpa [#allocation3], 0
    %s8 = scalar_lea.sflag [#allocation3], 1
    %9 = vsyncpa %s8, 0
    %10 = vsyncpa [#allocation6], 0
    %s11 = scalar_lea.sflag [#allocation6], 1
    %12 = vsyncpa %s11, 0
    %13 = vsyncpa [#allocation4], 0
    %s14 = scalar_lea.sflag [#allocation4], 1
    %15 = vsyncpa %s14, 0
    loop: start=0, step=1, limit=4
    $region2: #{tpu_custom_call.1} parent=1 // loop_pre_header
      _
    $region3: #{tpu_custom_call.1} parent=1 // loop_header
      %s17 = sphi 0, %s21
      %p18 = scmp.ge.s32.totalorder %s17, 4
      %s27 = sphi 0, %s29
      %s30 = sphi 0, %s27
      %s31 = sphi 0, %s30
      %s47 = sphi 0, %s31
      %s53 = sphi 0, %s55
      %s56 = sphi 0, %s53
      %s57 = sphi 0, %s56
      %s73 = sphi 0, %s57
      %s79 = sphi 0, %s81
      %s82 = sphi 0, %s79
      %s83 = sphi 0, %s82
      %s99 = sphi 0, %s83
    $region4: #{tpu_custom_call.1} parent=1 // loop_header_branch
      %20 = sbr.rel (%p18) target = $region8
    $region5: #{tpu_custom_call.1} parent=1 // loop_body
      %s22 = ssub.s32 %s17, 1
      %s23 = ssub.s32 %s17, 2
      %s24 = sadd.s32 %s17, 1
      %s25 = ssub.s32 %s17, %s24
      %p26 = scmp.eq.s32.totalorder %s25, 0
      %s28 = sadd.s32 %s27, 1
      %s29 = scalar_select %p26, %s27, %s28
      %p32 = pneg %p26
      %p33 = scmp.eq.s32.totalorder %s17, 1
      %p34 = por %p32, %p33
      %p35 = scmp.ne.s32.totalorder %s27, %s30
      %p36 = scmp.eq.s32.totalorder %s17, 0
      %p37 = por %p35, %p36
      %p38 = scmp.ne.s32.totalorder %s27, %s30
      %p39 = scmp.eq.s32.totalorder %s22, 1
      %p40 = por %p38, %p39
      %p41 = scmp.ne.s32.totalorder %s30, %s31
      %p42 = scmp.eq.s32.totalorder %s22, 0
      %p43 = por %p41, %p42
      %p44 = scmp.ne.s32.totalorder %s30, %s31
      %p45 = scmp.eq.s32.totalorder %s23, 1
      %p46 = por %p44, %p45
      %p48 = scmp.ne.s32.totalorder %s31, %s47
      %p49 = scmp.eq.s32.totalorder %s23, 0
      %p50 = por %p48, %p49
      %s51 = ssub.s32 %s17, %s24
      %p52 = scmp.eq.s32.totalorder %s51, 0
      %s54 = sadd.s32 %s53, 1
      %s55 = scalar_select %p52, %s53, %s54
      %p58 = pneg %p52
      %p59 = scmp.eq.s32.totalorder %s17, 1
      %p60 = por %p58, %p59
      %p61 = scmp.ne.s32.totalorder %s53, %s56
      %p62 = scmp.eq.s32.totalorder %s17, 0
      %p63 = por %p61, %p62
      %p64 = scmp.ne.s32.totalorder %s53, %s56
      %p65 = scmp.eq.s32.totalorder %s22, 1
      %p66 = por %p64, %p65
      %p67 = scmp.ne.s32.totalorder %s56, %s57
      %p68 = scmp.eq.s32.totalorder %s22, 0
      %p69 = por %p67, %p68
      %p70 = scmp.ne.s32.totalorder %s56, %s57
      %p71 = scmp.eq.s32.totalorder %s23, 1
      %p72 = por %p70, %p71
      %p74 = scmp.ne.s32.totalorder %s57, %s73
      %p75 = scmp.eq.s32.totalorder %s23, 0
      %p76 = por %p74, %p75
      %s77 = ssub.s32 %s17, %s24
      %p78 = scmp.eq.s32.totalorder %s77, 0
      %s80 = sadd.s32 %s79, 1
      %s81 = scalar_select %p78, %s79, %s80
      %p84 = pneg %p78
      %p85 = scmp.eq.s32.totalorder %s17, 1
      %p86 = por %p84, %p85
      %p87 = scmp.ne.s32.totalorder %s79, %s82
      %p88 = scmp.eq.s32.totalorder %s17, 0
      %p89 = por %p87, %p88
      %p90 = scmp.ne.s32.totalorder %s79, %s82
      %p91 = scmp.eq.s32.totalorder %s22, 1
      %p92 = por %p90, %p91
      %p93 = scmp.ne.s32.totalorder %s82, %s83
      %p94 = scmp.eq.s32.totalorder %s22, 0
      %p95 = por %p93, %p94
      %p96 = scmp.ne.s32.totalorder %s82, %s83
      %p97 = scmp.eq.s32.totalorder %s23, 1
      %p98 = por %p96, %p97
      %p100 = scmp.ne.s32.totalorder %s83, %s99
      %p101 = scmp.eq.s32.totalorder %s23, 0
      %p102 = por %p100, %p101
      %p103 = scmp.le.s32.totalorder 1, %s17
      %p104 = scmp.lt.s32.totalorder %s17, 3
      %p105 = pnand %p103, %p104
      %p106 = pneg %p105
      // Predicated region
      $region9: #{tpu_custom_call.1} parent=5 // pred_check
        _
      $region10: #{tpu_custom_call.1} parent=5 // pred_check_branch
        %108 = sbr.rel (%p105) target = $region12
      $region11: #{tpu_custom_call.1} parent=5 // pred_region
        %s109 = ssub.s32 %s17, 1
      $region12: #{tpu_custom_call.1} parent=5 // pred_fallthru
        _
      %p110 = scmp.lt.s32.totalorder %s17, 2
      // Predicated region
      $region13: #{tpu_custom_call.1} parent=5 // pred_check
        %p111 = pneg %p110
      $region14: #{tpu_custom_call.1} parent=5 // pred_check_branch
        %113 = sbr.rel (%p111) target = $region16
      $region15: #{tpu_custom_call.1} parent=5 // pred_region
        // Predicated region
        $region17: #{tpu_custom_call.1} parent=15 // pred_check
          %p114 = pneg %p37
        $region18: #{tpu_custom_call.1} parent=15 // pred_check_branch
          %116 = sbr.rel (%p114) target = $region20
        $region19: #{tpu_custom_call.1} parent=15 // pred_region
          %s117 = sand.u32 %s27, 1
          %s118 = scalar_lea.sflag [#allocation3], %s117
          %s119 = sand.u32 %s27, 1
          %s120 = smul.addr %s119, 8
          %s121 = scalar_lea.vmem [#allocation2], %s120
          %s123 = ssub.s32 128, 128
          %124 = vsyncadd %s118, %s123
          %s125 = smul.addr %s17, 128
          %s126 = scalar_lea.hbm %s0, %s125
          %s128 = sshll.u32 %s121, 4
          %s129 = int_to_ptr.vmem [resolvable:$true] %s128
          %131 = dma.hbm_to_vmem [thread:$0]  %s126, 128, %s129, %s118
        $region20: #{tpu_custom_call.1} parent=15 // pred_fallthru
          _
        // Predicated region
        $region21: #{tpu_custom_call.1} parent=15 // pred_check
          %p132 = pneg %p63
        $region22: #{tpu_custom_call.1} parent=15 // pred_check_branch
          %134 = sbr.rel (%p132) target = $region24
        $region23: #{tpu_custom_call.1} parent=15 // pred_region
          %s135 = sand.u32 %s53, 1
          %s136 = scalar_lea.sflag [#allocation6], %s135
          %s137 = sand.u32 %s53, 1
          %s138 = smul.addr %s137, 8
          %s139 = scalar_lea.vmem [#allocation5], %s138
          %s141 = ssub.s32 128, 128
          %142 = vsyncadd %s136, %s141
          %s143 = smul.addr %s17, 128
          %s144 = scalar_lea.hbm %s1, %s143
          %s146 = sshll.u32 %s139, 4
          %s147 = int_to_ptr.vmem [resolvable:$true] %s146
          %149 = dma.hbm_to_vmem [thread:$0]  %s144, 128, %s147, %s136
        $region24: #{tpu_custom_call.1} parent=15 // pred_fallthru
          _
      $region16: #{tpu_custom_call.1} parent=5 // pred_fallthru
        _
      %p150 = scmp.le.s32.totalorder 1, %s17
      %p151 = scmp.lt.s32.totalorder %s17, 3
      %p152 = pnand %p150, %p151
      %p153 = pneg %p152
      // Predicated region
      $region25: #{tpu_custom_call.1} parent=5 // pred_check
        _
      $region26: #{tpu_custom_call.1} parent=5 // pred_check_branch
        %155 = sbr.rel (%p152) target = $region28
      $region27: #{tpu_custom_call.1} parent=5 // pred_region
        %s156 = ssub.s32 %s17, 1
        %s157 = sand.u32 %s30, 1
        %s158 = scalar_lea.sflag [#allocation3], %s157
        %s159 = sand.u32 %s30, 1
        %s160 = smul.addr %s159, 8
        %s161 = scalar_lea.vmem [#allocation2], %s160
        // Predicated region
        $region29: #{tpu_custom_call.1} parent=27 // pred_check
          %p162 = pneg %p43
        $region30: #{tpu_custom_call.1} parent=27 // pred_check_branch
          %164 = sbr.rel (%p162) target = $region32
        $region31: #{tpu_custom_call.1} parent=27 // pred_region
          %165 = dma.done %s158, 128
        $region32: #{tpu_custom_call.1} parent=27 // pred_fallthru
          _
        %s166 = sand.u32 %s56, 1
        %s167 = scalar_lea.sflag [#allocation6], %s166
        %s168 = sand.u32 %s56, 1
        %s169 = smul.addr %s168, 8
        %s170 = scalar_lea.vmem [#allocation5], %s169
        // Predicated region
        $region33: #{tpu_custom_call.1} parent=27 // pred_check
          %p171 = pneg %p69
        $region34: #{tpu_custom_call.1} parent=27 // pred_check_branch
          %173 = sbr.rel (%p171) target = $region36
        $region35: #{tpu_custom_call.1} parent=27 // pred_region
          %174 = dma.done %s167, 128
        $region36: #{tpu_custom_call.1} parent=27 // pred_fallthru
          _
        %s175 = sand.u32 %s30, 1
        %s176 = scalar_lea.sflag [#allocation3], %s175
        %s177 = sand.u32 %s30, 1
        %s178 = smul.addr %s177, 8
        %s179 = scalar_lea.vmem [#allocation2], %s178
        %p180 = pneg %p43
        %p181 = pneg %p40
        %s182 = sand.u32 %s56, 1
        %s183 = scalar_lea.sflag [#allocation6], %s182
        %s184 = sand.u32 %s56, 1
        %s185 = smul.addr %s184, 8
        %s186 = scalar_lea.vmem [#allocation5], %s185
        %p187 = pneg %p69
        %p188 = pneg %p66
        %p189 = pneg %p95
        %p190 = pneg %p92
        %s191 = sand.u32 %s82, 1
        %s192 = scalar_lea.sflag [#allocation4], %s191
        %s193 = sand.u32 %s82, 1
        %s194 = smul.addr %s193, 8
        %s195 = scalar_lea.vmem [#allocation7], %s194
        %v196 = vld [vmem:[%s161] sm:$0xff]
        %v197 = vld [vmem:[%s170] sm:$0xff]
        %v198 = vlog2.pop %v196
        %v199 = vmul.f32 %v198, 0.6931472
        %v200 = vmax.f32 %v199, -100.0
        %v201 = vsub.f32 1.0, %v196
        %v202 = vlog2.pop %v201
        %v203 = vmul.f32 %v202, 0.6931472
        %v204 = vmax.f32 %v203, -100.0
        %v205 = vsub.f32 %v200, %v204
        %v206 = vmul.f32 %v197, %v205
        %v207 = vadd.f32 %v204, %v206
        %v208 = vadd.f32 %v207, 0.0
        %209 = vst [vmem:[%s195] sm:$0xff] %v208
        %s210 = sand.u32 %s82, 1
        %s211 = scalar_lea.sflag [#allocation4], %s210
        %s212 = sand.u32 %s82, 1
        %s213 = smul.addr %s212, 8
        %s214 = scalar_lea.vmem [#allocation7], %s213
        // Predicated region
        $region37: #{tpu_custom_call.1} parent=27 // pred_check
          %p215 = pneg %p92
        $region38: #{tpu_custom_call.1} parent=27 // pred_check_branch
          %217 = sbr.rel (%p215) target = $region40
        $region39: #{tpu_custom_call.1} parent=27 // pred_region
          %s219 = ssub.s32 128, 128
          %220 = vsyncadd %s211, %s219
          %s221 = smul.addr %s22, 128
          %s222 = scalar_lea.hbm %s2, %s221
          %s224 = sshll.u32 %s214, 4
          %s225 = int_to_ptr.vmem [resolvable:$true] %s224
          %227 = dma.vmem_to_hbm [thread:$0]  %s225, 128, %s222, %s211
        $region40: #{tpu_custom_call.1} parent=27 // pred_fallthru
          _
      $region28: #{tpu_custom_call.1} parent=5 // pred_fallthru
        _
      %p228 = scmp.le.s32.totalorder 2, %s17
      // Predicated region
      $region41: #{tpu_custom_call.1} parent=5 // pred_check
        %p229 = pneg %p228
      $region42: #{tpu_custom_call.1} parent=5 // pred_check_branch
        %231 = sbr.rel (%p229) target = $region44
      $region43: #{tpu_custom_call.1} parent=5 // pred_region
        %s232 = ssub.s32 %s17, 2
        // Predicated region
        $region45: #{tpu_custom_call.1} parent=43 // pred_check
          %p233 = pneg %p98
        $region46: #{tpu_custom_call.1} parent=43 // pred_check_branch
          %235 = sbr.rel (%p233) target = $region48
        $region47: #{tpu_custom_call.1} parent=43 // pred_region
          %s236 = sand.u32 %s83, 1
          %s237 = scalar_lea.sflag [#allocation4], %s236
          %s238 = sand.u32 %s83, 1
          %s239 = smul.addr %s238, 8
          %s240 = scalar_lea.vmem [#allocation7], %s239
          %241 = dma.done %s237, 128
        $region48: #{tpu_custom_call.1} parent=43 // pred_fallthru
          _
      $region44: #{tpu_custom_call.1} parent=5 // pred_fallthru
        _
    $region6: #{tpu_custom_call.1} parent=1 // loop_footer
      %s21 = sadd.s32 1, %s17
    $region7: #{tpu_custom_call.1} parent=1 // loop_footer_branch
      %16 = sbr.rel target = $region3
    $region8: #{tpu_custom_call.1} parent=1 // loop_exit
      _
    %242 = vsyncpa [#allocation3], 1
    %s243 = scalar_lea.sflag [#allocation3], 1
    %244 = vsyncpa %s243, 1
    %245 = vsyncpa [#allocation6], 1
    %s246 = scalar_lea.sflag [#allocation6], 1
    %247 = vsyncpa %s246, 1
    %248 = vsyncpa [#allocation4], 1
    %s249 = scalar_lea.sflag [#allocation4], 1
    %250 = vsyncpa %s249, 1

</llo_original>
